<compile_context>
chip_gen: v7x
topology: tpu7x:2x2x1
jax: 0.10.0
libtpu: 0.0.40
codegen_flags: <defaults>
</compile_context>

<pallas_src>
import functools

import jax
import jax.numpy as jnp
from jax.experimental import pallas as pl
from jax.experimental.pallas import tpu as pltpu


# -----------------------------------------------------------------------------
# Pallas kernel: per-atom MLP (nnmod) + per-batch dipole reduction for one tile
# -----------------------------------------------------------------------------
def _property_kernel(x_ref, cart_ref, w1_ref, b1_ref, w2t_ref, b2_ref, dip_ref):
    tile_b = dip_ref.shape[0]          # batches in this tile
    tile_a = x_ref.shape[0]            # atoms in this tile (= tile_b * N)
    n = tile_a // tile_b

    # Layer 1: the only real MXU work -- (TILE_A, F) @ (F, H), f32 accumulation.
    h = jnp.tanh(
        jnp.dot(x_ref[...], w1_ref[...], preferred_element_type=jnp.float32)
        + b1_ref[...]
    )                                                           # (TILE_A, H)

    # Layer 2 (H -> 1): degenerate MXU shape, so run it on the VPU/XLU instead:
    # elementwise multiply by w2^T and reduce over the lane (H) dim.
    out = jnp.sum(h * w2t_ref[...], axis=-1, keepdims=True) + b2_ref[0]  # (TILE_A, 1)

    # dipole[b] = sum_n out[b, n] * cart[b, n, :]
    # reshape + sublane reduce; no one-hot selector matmul, no extra HBM input.
    weighted = out * cart_ref[...]                              # (TILE_A, 3)
    dip_ref[...] = jnp.sum(weighted.reshape(tile_b, n, 3), axis=1)  # (TILE_B, 3)


def _pick_tile_b(B, N, F, vmem_budget_bytes=8 << 20):
    """Largest per-step batch tile whose double-buffered input streams fit a
    conservative VMEM budget (safe vs. the 32 MiB scoped default on all
    generations and the 64 MiB physical VMEM on v7x)."""
    per_b = 2 * N * (F + 4) * 4          # double-buffered f32 x-tile + cart-tile
    cap = max(1, vmem_budget_bytes // per_b)
    if B <= cap:
        return B
    tb = 8
    while B % (tb * 2) == 0 and tb * 2 <= cap:
        tb *= 2
    return tb if (B % tb == 0 and tb <= cap) else B


@functools.partial(jax.jit, static_argnames=("B", "N", "tile_b"))
def property_pallas(x, cart_flat, w1, b1, w2t, b2, *, B, N, tile_b=None):
    """x: (B*N, F) descriptor (density + species embedding already fused),
    cart_flat: (B*N, 3), w1: (F, H), b1: (1, H), w2t: (1, H), b2: (1,).
    Returns dipole (B, 3)."""
    BN, F = x.shape
    H = w1.shape[1]
    if tile_b is None:
        tile_b = _pick_tile_b(B, N, F)
    assert B % tile_b == 0, (B, tile_b)
    tile_a = tile_b * N
    grid = (B // tile_b,)

    in_specs = [
        pl.BlockSpec((tile_a, F), lambda i: (i, 0)),        # x   (streamed)
        pl.BlockSpec((tile_a, 3), lambda i: (i, 0)),        # cart(streamed)
        pl.BlockSpec((F, H), lambda i: (0, 0)),             # w1  (resident)
        pl.BlockSpec((1, H), lambda i: (0, 0)),             # b1  (resident)
        pl.BlockSpec((1, H), lambda i: (0, 0)),             # w2^T(resident)
        pl.BlockSpec(memory_space=pltpu.MemorySpace.SMEM),  # b2  (scalar, SMEM)
    ]
    return pl.pallas_call(
        _property_kernel,
        out_shape=jax.ShapeDtypeStruct((B, 3), jnp.float32),
        grid_spec=pltpu.PrefetchScalarGridSpec(
            num_scalar_prefetch=0,
            grid=grid,
            in_specs=in_specs,
            out_specs=pl.BlockSpec((tile_b, 3), lambda i: (i, 0)),
        ),
        # Each grid step writes disjoint dipole rows -> independent axis:
        # pipelined everywhere, and shardable across the two TCs on v7x.
        compiler_params=pltpu.CompilerParams(
            dimension_semantics=("parallel",)),
    )(x, cart_flat, w1, b1, w2t, b2)


# -----------------------------------------------------------------------------
# Glue: synthetic `density` module (plain JAX), reference forward
# -----------------------------------------------------------------------------
# TODO(synk): fuse the pair-list density accumulation into the Pallas pipeline
# (scalar-prefetched pair lists) once the real REANN density module is ported,
# to avoid the (B*N, F) HBM round-trip of the descriptor.
def density_fn(cart, numatoms, species, atom_index, shifts, alpha, rcut):
    """Synthetic embedded density: per-atom sum of Gaussian radial basis over
    neighbor pairs (atom_index: global pair list, shifts: PBC shifts)."""
    del numatoms, species  # shapes only in this synthetic stand-in
    cart_flat = cart.reshape(-1, 3)                    # (B*N, 3)
    ri = cart_flat[atom_index[0]]                      # (P, 3)
    rj = cart_flat[atom_index[1]] + shifts             # (P, 3)
    d2 = jnp.sum((ri - rj) ** 2, axis=-1)              # (P,)
    d = jnp.sqrt(d2 + 1e-12)
    fc = 0.5 * (jnp.cos(jnp.pi * jnp.minimum(d, rcut) / rcut) + 1.0)
    gauss = jnp.exp(-alpha[None, :] * d2[:, None]) * fc[:, None]   # (P, F)
    dens = jnp.zeros((cart_flat.shape[0], alpha.shape[0]),
                     dtype=jnp.float32).at[atom_index[0]].add(gauss)
    return dens


def reference_forward(cart, numatoms, species, atom_index, shifts, params):
    """Pure-JAX reference mirroring Property.forward."""
    B = numatoms.shape[0]
    species_flat = species.reshape(-1)
    dens = density_fn(cart, numatoms, species_flat, atom_index, shifts,
                      params["alpha"], params["rcut"])
    x = dens + params["emb"][species_flat]
    h = jnp.tanh(x @ params["w1"] + params["b1"])
    out = (h @ params["w2"] + params["b2"]).reshape(B, -1)        # (B, N)
    dipole = jnp.einsum("ij,ijk->ik", out, cart)                  # (B, 3)
    return dipole


if __name__ == "__main__":
    # Small shapes consistent with the module's forward
    B, N, F, H, NSPEC = 16, 8, 32, 32, 3
    key = jax.random.PRNGKey(0)
    k_cart, k_spec, k_emb, k_w1, k_b1, k_w2 = jax.random.split(key, 6)

    cart = jax.random.normal(k_cart, (B, N, 3), dtype=jnp.float32)
    species = jax.random.randint(k_spec, (B, N), 0, NSPEC, dtype=jnp.int32)
    numatoms = jnp.full((B,), N, dtype=jnp.int32)

    # Fully-connected intra-molecule neighbor list (global flat indices), no PBC
    pairs = []
    for b in range(B):
        for i in range(N):
            for j in range(N):
                if i != j:
                    pairs.append((b * N + i, b * N + j))
    atom_index = jnp.asarray(pairs, dtype=jnp.int32).T            # (2, P)
    shifts = jnp.zeros((atom_index.shape[1], 3), dtype=jnp.float32)

    # Deterministic parameters (synthetic; no checkpoint load)
    params = {
        "alpha": jnp.linspace(0.5, 2.0, F, dtype=jnp.float32),
        "rcut": jnp.float32(6.0),
        "emb": 0.1 * jax.random.normal(k_emb, (NSPEC, F), dtype=jnp.float32),
        "w1": jax.random.normal(k_w1, (F, H), dtype=jnp.float32) / jnp.sqrt(F),
        "b1": 0.01 * jax.random.normal(k_b1, (1, H), dtype=jnp.float32),
        "w2": jax.random.normal(k_w2, (H, 1), dtype=jnp.float32) / jnp.sqrt(H),
        "b2": jnp.full((1,), 0.05, dtype=jnp.float32),
    }

    # ---- Property.forward ----
    species_flat = species.reshape(-1)                            # species.view(-1)
    dens = density_fn(cart, numatoms, species_flat, atom_index, shifts,
                      params["alpha"], params["rcut"])            # (B*N, F)
    # Fuse the species-embedding shift here: a single HBM stream into the
    # kernel instead of a duplicated (B*N, F) spec_emb input.
    x = dens + params["emb"][species_flat]                        # (B*N, F)
    cart_flat = cart.reshape(B * N, 3)

    dipole = property_pallas(
        x, cart_flat,
        params["w1"], params["b1"], params["w2"].T, params["b2"],
        B=B, N=N,
        tile_b=8,   # 2 grid steps at demo size to exercise the pipelined grid
    )
    dipole = jax.block_until_ready(dipole)

    dipole_ref = reference_forward(cart, numatoms, species, atom_index,
                                   shifts, params)
    assert dipole.shape == (B, 3)
    assert jnp.allclose(dipole, dipole_ref, atol=1e-4, rtol=1e-4), (
        dipole, dipole_ref)
    print("KERNEL_OK")
</pallas_src>

<mosaic_0001>
module attributes {stable_mosaic.version = 11 : i64} {
  func.func @_property_kernel(%arg0: i32, %arg1: memref<64x32xf32, #tpu.memory_space<vmem>>, %arg2: memref<64x3xf32, #tpu.memory_space<vmem>>, %arg3: memref<32x32xf32, #tpu.memory_space<vmem>>, %arg4: memref<1x32xf32, #tpu.memory_space<vmem>>, %arg5: memref<1x32xf32, #tpu.memory_space<vmem>>, %arg6: memref<1xf32, #tpu.memory_space<smem>>, %arg7: memref<8x3xf32, #tpu.memory_space<vmem>>) attributes {dimension_semantics = [#tpu.dimension_semantics<parallel>], iteration_bounds = array<i64: 2>, scalar_prefetch = 0 : i64, scratch_operands = 0 : i64, tpu.core_type = #tpu.core_type<tc>, window_params = [{transform_indices = @transform_0, window_bounds = array<i64: 64, 32>}, {transform_indices = @transform_1, window_bounds = array<i64: 64, 3>}, {pipeline_mode = #tpu.pipeline_mode<synchronous>, transform_indices = @transform_2, window_bounds = array<i64: 32, 32>}, {pipeline_mode = #tpu.pipeline_mode<synchronous>, transform_indices = @transform_3, window_bounds = array<i64: 1, 32>}, {pipeline_mode = #tpu.pipeline_mode<synchronous>, transform_indices = @transform_4, window_bounds = array<i64: 1, 32>}, {transform_indices = @transform_5, window_bounds = array<i64: 1>}, {transform_indices = @transform_6, window_bounds = array<i64: 8, 3>}]} {
    %c0 = arith.constant 0 : index
    %c0_0 = arith.constant 0 : index
    %0 = vector.load %arg1[%c0, %c0_0] : memref<64x32xf32, #tpu.memory_space<vmem>>, vector<64x32xf32>
    %c0_1 = arith.constant 0 : index
    %c0_2 = arith.constant 0 : index
    %1 = vector.load %arg3[%c0_1, %c0_2] : memref<32x32xf32, #tpu.memory_space<vmem>>, vector<32x32xf32>
    %cst = arith.constant dense<0.000000e+00> : vector<64x32xf32>
    %2 = tpu.matmul %0, %1, %cst {dimension_numbers = #tpu.dot_dimension_numbers<[1], [0], [0], [1], [0, 0, 1, 1], [], []>} : vector<64x32xf32>, vector<32x32xf32>, vector<64x32xf32> -> vector<64x32xf32>
    %c0_3 = arith.constant 0 : index
    %c0_4 = arith.constant 0 : index
    %3 = vector.load %arg4[%c0_3, %c0_4] : memref<1x32xf32, #tpu.memory_space<vmem>>, vector<1x32xf32>
    %4 = vector.broadcast %3 : vector<1x32xf32> to vector<64x32xf32>
    %5 = arith.addf %2, %4 : vector<64x32xf32>
    %6 = math.tanh %5 : vector<64x32xf32>
    %c0_5 = arith.constant 0 : index
    %c0_6 = arith.constant 0 : index
    %7 = vector.load %arg5[%c0_5, %c0_6] : memref<1x32xf32, #tpu.memory_space<vmem>>, vector<1x32xf32>
    %8 = vector.broadcast %7 : vector<1x32xf32> to vector<64x32xf32>
    %9 = arith.mulf %6, %8 : vector<64x32xf32>
    %cst_7 = arith.constant dense<0.000000e+00> : vector<64xf32>
    %10 = vector.multi_reduction <add>, %9, %cst_7 [1] : vector<64x32xf32> to vector<64xf32>
    %11 = vector.shape_cast %10 : vector<64xf32> to vector<64x1xf32>
    %c0_8 = arith.constant 0 : index
    %12 = memref.load %arg6[%c0_8] : memref<1xf32, #tpu.memory_space<smem>>
    %13 = vector.broadcast %12 : f32 to vector<64x1xf32>
    %14 = arith.addf %11, %13 : vector<64x1xf32>
    %c0_9 = arith.constant 0 : index
    %c0_10 = arith.constant 0 : index
    %15 = vector.load %arg2[%c0_9, %c0_10] : memref<64x3xf32, #tpu.memory_space<vmem>>, vector<64x3xf32>
    %16 = vector.broadcast %14 : vector<64x1xf32> to vector<64x3xf32>
    %17 = arith.mulf %16, %15 : vector<64x3xf32>
    %18 = vector.shape_cast %17 : vector<64x3xf32> to vector<8x8x3xf32>
    %cst_11 = arith.constant dense<0.000000e+00> : vector<8x3xf32>
    %19 = vector.multi_reduction <add>, %18, %cst_11 [1] : vector<8x8x3xf32> to vector<8x3xf32>
    %c0_12 = arith.constant 0 : index
    %c0_13 = arith.constant 0 : index
    %20 = vector.load %arg7[%c0_12, %c0_13] : memref<8x3xf32, #tpu.memory_space<vmem>>, vector<8x3xf32>
    tpu.vector_store %arg7[%c0_12, %c0_13], %19 {strides = array<i32>} : memref<8x3xf32, #tpu.memory_space<vmem>>, vector<8x3xf32>,
    return
  }
  func.func @transform_0(%arg0: i32) -> (i32, i32) {
    %c0_i32 = arith.constant 0 : i32
    %c0_i32_0 = arith.constant 0 : i32
    return %arg0, %c0_i32 : i32, i32
  }
  func.func @transform_1(%arg0: i32) -> (i32, i32) {
    %c0_i32 = arith.constant 0 : i32
    %c0_i32_0 = arith.constant 0 : i32
    return %arg0, %c0_i32 : i32, i32
  }
  func.func @transform_2(%arg0: i32) -> (i32, i32) {
    %c0_i32 = arith.constant 0 : i32
    %c0_i32_0 = arith.constant 0 : i32
    %c0_i32_1 = arith.constant 0 : i32
    return %c0_i32, %c0_i32_0 : i32, i32
  }
  func.func @transform_3(%arg0: i32) -> (i32, i32) {
    %c0_i32 = arith.constant 0 : i32
    %c0_i32_0 = arith.constant 0 : i32
    %c0_i32_1 = arith.constant 0 : i32
    return %c0_i32, %c0_i32_0 : i32, i32
  }
  func.func @transform_4(%arg0: i32) -> (i32, i32) {
    %c0_i32 = arith.constant 0 : i32
    %c0_i32_0 = arith.constant 0 : i32
    %c0_i32_1 = arith.constant 0 : i32
    return %c0_i32, %c0_i32_0 : i32, i32
  }
  func.func @transform_5(%arg0: i32) -> i32 {
    %c0_i32 = arith.constant 0 : i32
    %c0_i32_0 = arith.constant 0 : i32
    return %c0_i32 : i32
  }
  func.func @transform_6(%arg0: i32) -> (i32, i32) {
    %c0_i32 = arith.constant 0 : i32
    %c0_i32_0 = arith.constant 0 : i32
    return %arg0, %c0_i32 : i32, i32
  }
}

</mosaic_0001>

<llo_original>
// kernel: property_pallas.1
$region0: #{property_pallas.1}
  #allocation0 [shape = 'u32[]', space=smem, size = 0x4, offset = 0x4, fixed_abs, tag = 'smem constant byte address 0x4 - core index']
  #allocation1 [shape = 'u32[144,128]{1,0:T(1,128)}', space=vmem, size = 0x12000, scoped, tag = 'internal scratch']
  #allocation2 [shape = 'f32[1]{0:T(128)S(6)}', space=smem, size = 0x200, scoped, tag = 'scoped memory for property_pallas.1']
  %s0 = inlined_call_operand.vmem [shape: f32[128,32], index: 0, kind: input, shape index: {}]
  %s1 = inlined_call_operand.vmem [shape: f32[128,3], index: 1, kind: input, shape index: {}]
  %s2 = inlined_call_operand.vmem [shape: f32[32,32], index: 2, kind: input, shape index: {}]
  %s3 = inlined_call_operand.vmem [shape: f32[1,32], index: 3, kind: input, shape index: {}]
  %s4 = inlined_call_operand.vmem [shape: f32[1,32], index: 4, kind: input, shape index: {}]
  %s5 = inlined_call_operand.<no memory space> [shape: f32[1], index: 5, kind: input, shape index: {}]
  %s6 = inlined_call_operand.vmem [shape: f32[16,3], index: 6, kind: output, shape index: {}]
  %s7 = sld [smem:[#allocation0]]
  $region57: #{property_pallas.1} parent=0
    _
  %s9 = ssub.s32 1, %s7
  %s10 = scalar_select 0, %s9, %s7
  %11 = sst [smem:[#allocation2]] %s5
  loop: start=0, step=1, limit=4
  $region2: #{property_pallas.1} parent=0 // loop_pre_header
    _
  $region3: #{property_pallas.1} parent=0 // loop_header
    %s13 = sphi 0, %s17
    %p14 = scmp.ge.s32.totalorder %s13, 4
    %s23 = sphi 0, %s25
    %s26 = sphi 0, %s23
    %s27 = sphi 0, %s26
    %s43 = sphi 0, %s27
    %s49 = sphi 0, %s51
    %s52 = sphi 0, %s49
    %s53 = sphi 0, %s52
    %s69 = sphi 0, %s53
    %s73 = sphi 0, %s73
    %s75 = sphi 0, %s73
    %s76 = sphi 0, %s75
    %s90 = sphi 0, %s76
    %s94 = sphi 0, %s94
    %s96 = sphi 0, %s94
    %s97 = sphi 0, %s96
    %s111 = sphi 0, %s97
    %s115 = sphi 0, %s115
    %s117 = sphi 0, %s115
    %s118 = sphi 0, %s117
    %s132 = sphi 0, %s118
    %s136 = sphi 0, %s136
    %s138 = sphi 0, %s136
    %s139 = sphi 0, %s138
    %s153 = sphi 0, %s139
    %s159 = sphi 0, %s161
    %s162 = sphi 0, %s159
    %s163 = sphi 0, %s162
    %s179 = sphi 0, %s163
  $region4: #{property_pallas.1} parent=0 // loop_header_branch
    %16 = sbr.rel (%p14) target = $region8
  $region5: #{property_pallas.1} parent=0 // loop_body
    %s18 = ssub.s32 %s13, 1
    %s19 = ssub.s32 %s13, 2
    %s20 = sadd.s32 %s13, 1
    %s21 = ssub.s32 %s13, %s20
    %p22 = scmp.eq.s32.totalorder %s21, 0
    %s24 = sadd.s32 %s23, 1
    %s25 = scalar_select %p22, %s23, %s24
    %p28 = pneg %p22
    %p29 = scmp.eq.s32.totalorder %s13, 1
    %p30 = por %p28, %p29
    %p31 = scmp.ne.s32.totalorder %s23, %s26
    %p32 = scmp.eq.s32.totalorder %s13, 0
    %p33 = por %p31, %p32
    %p34 = scmp.ne.s32.totalorder %s23, %s26
    %p35 = scmp.eq.s32.totalorder %s18, 1
    %p36 = por %p34, %p35
    %p37 = scmp.ne.s32.totalorder %s26, %s27
    %p38 = scmp.eq.s32.totalorder %s18, 0
    %p39 = por %p37, %p38
    %p40 = scmp.ne.s32.totalorder %s26, %s27
    %p41 = scmp.eq.s32.totalorder %s19, 1
    %p42 = por %p40, %p41
    %p44 = scmp.ne.s32.totalorder %s27, %s43
    %p45 = scmp.eq.s32.totalorder %s19, 0
    %p46 = por %p44, %p45
    %s47 = ssub.s32 %s13, %s20
    %p48 = scmp.eq.s32.totalorder %s47, 0
    %s50 = sadd.s32 %s49, 1
    %s51 = scalar_select %p48, %s49, %s50
    %p54 = pneg %p48
    %p55 = scmp.eq.s32.totalorder %s13, 1
    %p56 = por %p54, %p55
    %p57 = scmp.ne.s32.totalorder %s49, %s52
    %p58 = scmp.eq.s32.totalorder %s13, 0
    %p59 = por %p57, %p58
    %p60 = scmp.ne.s32.totalorder %s49, %s52
    %p61 = scmp.eq.s32.totalorder %s18, 1
    %p62 = por %p60, %p61
    %p63 = scmp.ne.s32.totalorder %s52, %s53
    %p64 = scmp.eq.s32.totalorder %s18, 0
    %p65 = por %p63, %p64
    %p66 = scmp.ne.s32.totalorder %s52, %s53
    %p67 = scmp.eq.s32.totalorder %s19, 1
    %p68 = por %p66, %p67
    %p70 = scmp.ne.s32.totalorder %s53, %s69
    %p71 = scmp.eq.s32.totalorder %s19, 0
    %p72 = por %p70, %p71
    %s74 = sadd.s32 %s73, 1
    %p77 = scmp.eq.s32.totalorder %s13, 1
    %p78 = scmp.ne.s32.totalorder %s73, %s75
    %p79 = scmp.eq.s32.totalorder %s13, 0
    %p80 = por %p78, %p79
    %p81 = scmp.ne.s32.totalorder %s73, %s75
    %p82 = scmp.eq.s32.totalorder %s18, 1
    %p83 = por %p81, %p82
    %p84 = scmp.ne.s32.totalorder %s75, %s76
    %p85 = scmp.eq.s32.totalorder %s18, 0
    %p86 = por %p84, %p85
    %p87 = scmp.ne.s32.totalorder %s75, %s76
    %p88 = scmp.eq.s32.totalorder %s19, 1
    %p89 = por %p87, %p88
    %p91 = scmp.ne.s32.totalorder %s76, %s90
    %p92 = scmp.eq.s32.totalorder %s19, 0
    %p93 = por %p91, %p92
    %s95 = sadd.s32 %s94, 1
    %p98 = scmp.eq.s32.totalorder %s13, 1
    %p99 = scmp.ne.s32.totalorder %s94, %s96
    %p100 = scmp.eq.s32.totalorder %s13, 0
    %p101 = por %p99, %p100
    %p102 = scmp.ne.s32.totalorder %s94, %s96
    %p103 = scmp.eq.s32.totalorder %s18, 1
    %p104 = por %p102, %p103
    %p105 = scmp.ne.s32.totalorder %s96, %s97
    %p106 = scmp.eq.s32.totalorder %s18, 0
    %p107 = por %p105, %p106
    %p108 = scmp.ne.s32.totalorder %s96, %s97
    %p109 = scmp.eq.s32.totalorder %s19, 1
    %p110 = por %p108, %p109
    %p112 = scmp.ne.s32.totalorder %s97, %s111
    %p113 = scmp.eq.s32.totalorder %s19, 0
    %p114 = por %p112, %p113
    %s116 = sadd.s32 %s115, 1
    %p119 = scmp.eq.s32.totalorder %s13, 1
    %p120 = scmp.ne.s32.totalorder %s115, %s117
    %p121 = scmp.eq.s32.totalorder %s13, 0
    %p122 = por %p120, %p121
    %p123 = scmp.ne.s32.totalorder %s115, %s117
    %p124 = scmp.eq.s32.totalorder %s18, 1
    %p125 = por %p123, %p124
    %p126 = scmp.ne.s32.totalorder %s117, %s118
    %p127 = scmp.eq.s32.totalorder %s18, 0
    %p128 = por %p126, %p127
    %p129 = scmp.ne.s32.totalorder %s117, %s118
    %p130 = scmp.eq.s32.totalorder %s19, 1
    %p131 = por %p129, %p130
    %p133 = scmp.ne.s32.totalorder %s118, %s132
    %p134 = scmp.eq.s32.totalorder %s19, 0
    %p135 = por %p133, %p134
    %s137 = sadd.s32 %s136, 1
    %p140 = scmp.eq.s32.totalorder %s13, 1
    %p141 = scmp.ne.s32.totalorder %s136, %s138
    %p142 = scmp.eq.s32.totalorder %s13, 0
    %p143 = por %p141, %p142
    %p144 = scmp.ne.s32.totalorder %s136, %s138
    %p145 = scmp.eq.s32.totalorder %s18, 1
    %p146 = por %p144, %p145
    %p147 = scmp.ne.s32.totalorder %s138, %s139
    %p148 = scmp.eq.s32.totalorder %s18, 0
    %p149 = por %p147, %p148
    %p150 = scmp.ne.s32.totalorder %s138, %s139
    %p151 = scmp.eq.s32.totalorder %s19, 1
    %p152 = por %p150, %p151
    %p154 = scmp.ne.s32.totalorder %s139, %s153
    %p155 = scmp.eq.s32.totalorder %s19, 0
    %p156 = por %p154, %p155
    %s157 = ssub.s32 %s13, %s20
    %p158 = scmp.eq.s32.totalorder %s157, 0
    %s160 = sadd.s32 %s159, 1
    %s161 = scalar_select %p158, %s159, %s160
    %p164 = pneg %p158
    %p165 = scmp.eq.s32.totalorder %s13, 1
    %p166 = por %p164, %p165
    %p167 = scmp.ne.s32.totalorder %s159, %s162
    %p168 = scmp.eq.s32.totalorder %s13, 0
    %p169 = por %p167, %p168
    %p170 = scmp.ne.s32.totalorder %s159, %s162
    %p171 = scmp.eq.s32.totalorder %s18, 1
    %p172 = por %p170, %p171
    %p173 = scmp.ne.s32.totalorder %s162, %s163
    %p174 = scmp.eq.s32.totalorder %s18, 0
    %p175 = por %p173, %p174
    %p176 = scmp.ne.s32.totalorder %s162, %s163
    %p177 = scmp.eq.s32.totalorder %s19, 1
    %p178 = por %p176, %p177
    %p180 = scmp.ne.s32.totalorder %s163, %s179
    %p181 = scmp.eq.s32.totalorder %s19, 0
    %p182 = por %p180, %p181
    %p183 = scmp.le.s32.totalorder 1, %s13
    %p184 = scmp.lt.s32.totalorder %s13, 3
    %p185 = pnand %p183, %p184
    %p186 = pneg %p185
    // Predicated region
    $region9: #{property_pallas.1} parent=5 // pred_check
      _
    $region10: #{property_pallas.1} parent=5 // pred_check_branch
      %188 = sbr.rel (%p185) target = $region12
    $region11: #{property_pallas.1} parent=5 // pred_region
      %s189 = ssub.s32 %s13, 1
      // Predicated region
      $region13: #{property_pallas.1} parent=11 // pred_check
        %p190 = pneg %p86
      $region14: #{property_pallas.1} parent=11 // pred_check_branch
        %192 = sbr.rel (%p190) target = $region16
      $region15: #{property_pallas.1} parent=11 // pred_region
        _
      $region16: #{property_pallas.1} parent=11 // pred_fallthru
        _
      // Predicated region
      $region17: #{property_pallas.1} parent=11 // pred_check
        %p193 = pneg %p107
      $region18: #{property_pallas.1} parent=11 // pred_check_branch
        %195 = sbr.rel (%p193) target = $region20
      $region19: #{property_pallas.1} parent=11 // pred_region
        _
      $region20: #{property_pallas.1} parent=11 // pred_fallthru
        _
      // Predicated region
      $region21: #{property_pallas.1} parent=11 // pred_check
        %p196 = pneg %p128
      $region22: #{property_pallas.1} parent=11 // pred_check_branch
        %198 = sbr.rel (%p196) target = $region24
      $region23: #{property_pallas.1} parent=11 // pred_region
        _
      $region24: #{property_pallas.1} parent=11 // pred_fallthru
        _
      // Predicated region
      $region25: #{property_pallas.1} parent=11 // pred_check
        %p199 = pneg %p149
      $region26: #{property_pallas.1} parent=11 // pred_check_branch
        %201 = sbr.rel (%p199) target = $region28
      $region27: #{property_pallas.1} parent=11 // pred_region
        _
      $region28: #{property_pallas.1} parent=11 // pred_fallthru
        _
    $region12: #{property_pallas.1} parent=5 // pred_fallthru
      _
    %p202 = scmp.lt.s32.totalorder %s13, 2
    // Predicated region
    $region29: #{property_pallas.1} parent=5 // pred_check
      %p203 = pneg %p202
    $region30: #{property_pallas.1} parent=5 // pred_check_branch
      %205 = sbr.rel (%p203) target = $region32
    $region31: #{property_pallas.1} parent=5 // pred_region
      // Predicated region
      $region33: #{property_pallas.1} parent=31 // pred_check
        %p206 = pneg %p33
      $region34: #{property_pallas.1} parent=31 // pred_check_branch
        %208 = sbr.rel (%p206) target = $region36
      $region35: #{property_pallas.1} parent=31 // pred_region
        %s209 = smul.u32 8, %s13
        %p210 = scmp.lt.s32.totalorder %s209, 15
        %s211 = scalar_select %p210, %s209, 15
        %s212 = smul.addr %s211, 8
        %s213 = scalar_lea.vmem %s0, %s212
        %s214 = smul.u32 8, %s13
      $region36: #{property_pallas.1} parent=31 // pred_fallthru
        _
      // Predicated region
      $region37: #{property_pallas.1} parent=31 // pred_check
        %p215 = pneg %p59
      $region38: #{property_pallas.1} parent=31 // pred_check_branch
        %217 = sbr.rel (%p215) target = $region40
      $region39: #{property_pallas.1} parent=31 // pred_region
        %s218 = smul.u32 8, %s13
        %p219 = scmp.lt.s32.totalorder %s218, 15
        %s220 = scalar_select %p219, %s218, 15
        %s221 = smul.addr %s220, 8
        %s222 = scalar_lea.vmem %s1, %s221
        %s223 = smul.u32 8, %s13
      $region40: #{property_pallas.1} parent=31 // pred_fallthru
        _
    $region32: #{property_pallas.1} parent=5 // pred_fallthru
      _
    %p224 = scmp.le.s32.totalorder 1, %s13
    %p225 = scmp.lt.s32.totalorder %s13, 3
    %p226 = pnand %p224, %p225
    %p227 = pneg %p226
    // Predicated region
    $region41: #{property_pallas.1} parent=5 // pred_check
      _
    $region42: #{property_pallas.1} parent=5 // pred_check_branch
      %229 = sbr.rel (%p226) target = $region44
    $region43: #{property_pallas.1} parent=5 // pred_region
      %s230 = ssub.s32 %s13, 1
      %s231 = smul.u32 8, %s18
      %p232 = scmp.lt.s32.totalorder %s231, 15
      %s233 = scalar_select %p232, %s231, 15
      %s234 = smul.addr %s233, 8
      %s235 = scalar_lea.vmem %s0, %s234
      %p236 = pneg %p39
      %p237 = pneg %p36
      %s238 = smul.u32 8, %s18
      %p239 = scmp.lt.s32.totalorder %s238, 15
      %s240 = scalar_select %p239, %s238, 15
      %s241 = smul.addr %s240, 8
      %s242 = scalar_lea.vmem %s1, %s241
      %p243 = pneg %p65
      %p244 = pneg %p62
      %p245 = pneg %p86
      %p246 = pneg %p83
      %p247 = pneg %p107
      %p248 = pneg %p104
      %p249 = pneg %p128
      %p250 = pneg %p125
      %p251 = pneg %p149
      %p252 = pneg %p146
      %p253 = pneg %p175
      %p254 = pneg %p172
      %p255 = scmp.lt.s32.totalorder %s18, 1
      %s256 = scalar_select %p255, %s18, 1
      %s257 = smul.addr %s256, 8
      %s258 = scalar_lea.vmem %s6, %s257
      %s259 = smul.u32 8, %s18
      %p260 = scmp.lt.s32.totalorder %s259, 15
      %s261 = scalar_select %p260, %s259, 15
      %s262 = smul.addr %s261, 8
      %s263 = scalar_lea.vmem %s0, %s262
      %s264 = smul.u32 8, %s18
      %s265 = smul.u32 8, %s18
      %p266 = scmp.lt.s32.totalorder %s265, 15
      %s267 = scalar_select %p266, %s265, 15
      %s268 = smul.addr %s267, 8
      %s269 = scalar_lea.vmem %s1, %s268
      %s270 = smul.u32 8, %s18
      %p271 = scmp.lt.s32.totalorder %s18, 1
      %s272 = scalar_select %p271, %s18, 1
      %s273 = smul.addr %s272, 8
      %s274 = scalar_lea.vmem %s6, %s273
      %v275 = vld [vmem:[%s263] sm:$0xff]
      %v276 = vld [vmem:[%s263 + $0x8] sm:$0xff]
      %v277 = vld [vmem:[%s263 + $0x10] sm:$0xff]
      %v278 = vld [vmem:[%s263 + $0x18] sm:$0xff]
      %v279 = vld [vmem:[%s263 + $0x20] sm:$0xff]
      %v280 = vld [vmem:[%s263 + $0x28] sm:$0xff]
      %v281 = vld [vmem:[%s263 + $0x30] sm:$0xff]
      %v282 = vld [vmem:[%s263 + $0x38] sm:$0xff]
      %v283 = vld [vmem:[%s2] sm:$0xff]
      %v284 = vld [vmem:[%s2 + $0x8] sm:$0xff]
      %v285 = vld [vmem:[%s2 + $0x10] sm:$0xff]
      %v286 = vld [vmem:[%s2 + $0x18] sm:$0xff]
      %v287 = vld [vmem:[%s3] sm:$0x1]
      %v289 = vlaneseq
      %v290 = vshrl.u32 %v289, 7
      %v291 = vsub.s32 0, %v290
      %v292 = vrot.slane %v287, %v291
      %vm294 = vcmask 261120
      %v296 = vsel %vm294, %v275, 0
      %v299 = vsel %vm294, %v276, 0
      %v302 = vsel %vm294, %v277, 0
      %v305 = vsel %vm294, %v278, 0
      %v308 = vsel %vm294, %v279, 0
      %v311 = vsel %vm294, %v280, 0
      %v314 = vsel %vm294, %v281, 0
      %v317 = vsel %vm294, %v282, 0
      %319 = vmatprep.subr.mxu0 0.0
      %320 = vmatpush1.msra.mxu0 %v283
      %321 = vmatprep.subr.mxu0 0.0
      %322 = vmatpush1.msra.mxu0 %v284
      %323 = vmatprep.subr.mxu0 0.0
      %324 = vmatpush1.msra.mxu0 %v285
      %325 = vmatprep.subr.mxu0 0.0
      %326 = vmatpush1.msra.mxu0 %v286
      %327 = vmatprep.subr.mxu0 0.0
      %328 = vmatpush1.msra.mxu0 0.0
      %329 = vmatprep.subr.mxu0 0.0
      %330 = vmatpush1.msra.mxu0 0.0
      %331 = vmatprep.subr.mxu0 0.0
      %332 = vmatpush1.msra.mxu0 0.0
      %333 = vmatprep.subr.mxu0 0.0
      %334 = vmatpush1.msra.mxu0 0.0
      %335 = vmatprep.subr.mxu0 0.0
      %336 = vmatpush1.msra.mxu0 0.0
      %337 = vmatprep.subr.mxu0 0.0
      %338 = vmatpush1.msra.mxu0 0.0
      %339 = vmatprep.subr.mxu0 0.0
      %340 = vmatpush1.msra.mxu0 0.0
      %341 = vmatprep.subr.mxu0 0.0
      %342 = vmatpush1.msra.mxu0 0.0
      %343 = vmatprep.subr.mxu0 0.0
      %344 = vmatpush1.msra.mxu0 0.0
      %345 = vmatprep.subr.mxu0 0.0
      %346 = vmatpush1.msra.mxu0 0.0
      %347 = vmatprep.subr.mxu0 0.0
      %348 = vmatpush1.msra.mxu0 0.0
      %349 = vmatprep.subr.mxu0 0.0
      %350 = vmatpush1.msra.mxu0 0.0
      %351 = vmatprep.subr.mxu0 0.0
      %352 = vmatpush1.msra.mxu0 0.0
      %353 = vmatprep.subr.mxu0 0.0
      %354 = vmatpush1.msra.mxu0 0.0
      %355 = vmatprep.subr.mxu0 0.0
      %356 = vmatpush1.msra.mxu0 0.0
      %357 = vmatprep.subr.mxu0 0.0
      %358 = vmatpush1.msra.mxu0 0.0
      %359 = vmatprep.subr.mxu0 0.0
      %360 = vmatpush1.msra.mxu0 0.0
      %361 = vmatprep.subr.mxu0 0.0
      %362 = vmatpush1.msra.mxu0 0.0
      %363 = vmatprep.subr.mxu0 0.0
      %364 = vmatpush1.msra.mxu0 0.0
      %365 = vmatprep.subr.mxu0 0.0
      %366 = vmatpush1.msra.mxu0 0.0
      %367 = vmatprep.subr.mxu0 0.0
      %368 = vmatpush1.msra.mxu0 0.0
      %369 = vmatprep.subr.mxu0 0.0
      %370 = vmatpush1.msra.mxu0 0.0
      %371 = vmatprep.subr.mxu0 0.0
      %372 = vmatpush1.msra.mxu0 0.0
      %373 = vmatprep.subr.mxu0 0.0
      %374 = vmatpush1.msra.mxu0 0.0
      %375 = vmatprep.subr.mxu0 0.0
      %376 = vmatpush1.msra.mxu0 0.0
      %377 = vmatprep.subr.mxu0 0.0
      %378 = vmatpush1.msra.mxu0 0.0
      %379 = vmatprep.subr.mxu0 0.0
      %380 = vmatpush1.msra.mxu0 0.0
      %381 = vmatprep.subr.mxu0 0.0
      %382 = vmatpush1.msra.mxu0 0.0
      %383 = vmatprep.mubr.f32.mxu0 0.0
      %384 = vmatmul.mubr.f32.gmra.mrb[0].mxu0 %v296
      %v385 = vpop.f32.mrb[0].mxu0
      %v386 = vadd.f32 %v292, %v385
      %v387 = vpop.f32.mrb[0].mxu0
      %388 = vmatprep.mubr.f32.mxu0 0.0
      %389 = vmatmul.mubr.f32.gmra.mrb[0].mxu0 %v299
      %v390 = vpop.f32.mrb[0].mxu0
      %v391 = vadd.f32 %v292, %v390
      %v392 = vpop.f32.mrb[0].mxu0
      %393 = vmatprep.mubr.f32.mxu0 0.0
      %394 = vmatmul.mubr.f32.gmra.mrb[0].mxu0 %v302
      %v395 = vpop.f32.mrb[0].mxu0
      %v396 = vadd.f32 %v292, %v395
      %v397 = vpop.f32.mrb[0].mxu0
      %398 = vmatprep.mubr.f32.mxu0 0.0
      %399 = vmatmul.mubr.f32.gmra.mrb[0].mxu0 %v305
      %v400 = vpop.f32.mrb[0].mxu0
      %v401 = vadd.f32 %v292, %v400
      %v402 = vpop.f32.mrb[0].mxu0
      %403 = vmatprep.mubr.f32.mxu0 0.0
      %404 = vmatmul.mubr.f32.gmra.mrb[0].mxu0 %v308
      %v405 = vpop.f32.mrb[0].mxu0
      %v406 = vadd.f32 %v292, %v405
      %v407 = vpop.f32.mrb[0].mxu0
      %408 = vmatprep.mubr.f32.mxu0 0.0
      %409 = vmatmul.mubr.f32.gmra.mrb[0].mxu0 %v311
      %v410 = vpop.f32.mrb[0].mxu0
      %v411 = vadd.f32 %v292, %v410
      %v412 = vpop.f32.mrb[0].mxu0
      %413 = vmatprep.mubr.f32.mxu0 0.0
      %414 = vmatmul.mubr.f32.gmra.mrb[0].mxu0 %v314
      %v415 = vpop.f32.mrb[0].mxu0
      %v416 = vadd.f32 %v292, %v415
      %v417 = vpop.f32.mrb[0].mxu0
      %418 = vmatprep.mubr.f32.mxu0 0.0
      %419 = vmatmul.mubr.f32.gmra.mrb[0].mxu0 %v317
      %v420 = vpop.f32.mrb[0].mxu0
      %v421 = vadd.f32 %v292, %v420
      %v422 = vpop.f32.mrb[0].mxu0
      %423 = vdwg.mxu0
      %v424 = vtanh.pop %v386
      %v425 = vtanh.pop %v391
      %v426 = vtanh.pop %v396
      %v427 = vtanh.pop %v401
      %v428 = vtanh.pop %v406
      %v429 = vtanh.pop %v411
      %v430 = vtanh.pop %v416
      %v431 = vtanh.pop %v421
      %v432 = vld [vmem:[%s4] sm:$0x1]
      %v434 = vlaneseq
      %v435 = vshrl.u32 %v434, 7
      %v436 = vsub.s32 0, %v435
      %v437 = vrot.slane %v432, %v436
      %v439 = vmul.f32 %v424, %v437
      %v440 = vmul.f32 %v425, %v437
      %v441 = vmul.f32 %v426, %v437
      %v442 = vmul.f32 %v427, %v437
      %v443 = vmul.f32 %v428, %v437
      %v444 = vmul.f32 %v429, %v437
      %v445 = vmul.f32 %v430, %v437
      %v446 = vmul.f32 %v431, %v437
      %v447 = vsel %vm294, %v439, 0.0
      %448 = vadd.xlane.f32.xlu0 %v447
      %v449 = vpop.xlane.xlu0 %448
      %v450 = vsel %vm294, %v440, 0.0
      %451 = vadd.xlane.f32.xlu0 %v450
      %v452 = vpop.xlane.xlu0 %451
      %v453 = vsel %vm294, %v441, 0.0
      %454 = vadd.xlane.f32.xlu0 %v453
      %v455 = vpop.xlane.xlu0 %454
      %v456 = vsel %vm294, %v442, 0.0
      %457 = vadd.xlane.f32.xlu0 %v456
      %v458 = vpop.xlane.xlu0 %457
      %v459 = vsel %vm294, %v443, 0.0
      %460 = vadd.xlane.f32.xlu0 %v459
      %v461 = vpop.xlane.xlu0 %460
      %v462 = vsel %vm294, %v444, 0.0
      %463 = vadd.xlane.f32.xlu0 %v462
      %v464 = vpop.xlane.xlu0 %463
      %v465 = vsel %vm294, %v445, 0.0
      %466 = vadd.xlane.f32.xlu0 %v465
      %v467 = vpop.xlane.xlu0 %466
      %v468 = vsel %vm294, %v446, 0.0
      %469 = vadd.xlane.f32.xlu0 %v468
      %v470 = vpop.xlane.xlu0 %469
      %s471 = sld [smem:[#allocation2]]
      %v472 = vstv %s471
      %v473 = vadd.f32 %v449, %v472
      %v474 = vadd.f32 %v452, %v472
      %v475 = vadd.f32 %v455, %v472
      %v476 = vadd.f32 %v458, %v472
      %v477 = vadd.f32 %v461, %v472
      %v478 = vadd.f32 %v464, %v472
      %v479 = vadd.f32 %v467, %v472
      %v480 = vadd.f32 %v470, %v472
      %v481 = vld [vmem:[%s269] sm:$0xff]
      %v482 = vld [vmem:[%s269 + $0x8] sm:$0xff]
      %v483 = vld [vmem:[%s269 + $0x10] sm:$0xff]
      %v484 = vld [vmem:[%s269 + $0x18] sm:$0xff]
      %v485 = vld [vmem:[%s269 + $0x20] sm:$0xff]
      %v486 = vld [vmem:[%s269 + $0x28] sm:$0xff]
      %v487 = vld [vmem:[%s269 + $0x30] sm:$0xff]
      %v488 = vld [vmem:[%s269 + $0x38] sm:$0xff]
      %v489 = vmul.f32 %v473, %v481
      %v490 = vmul.f32 %v474, %v482
      %v491 = vmul.f32 %v475, %v483
      %v492 = vmul.f32 %v476, %v484
      %v493 = vmul.f32 %v477, %v485
      %v494 = vmul.f32 %v478, %v486
      %v495 = vmul.f32 %v479, %v487
      %v496 = vmul.f32 %v480, %v488
      %vm497 = vcmask 23552
      %v498 = vsel %vm497, %v489, 0.0
      %v499 = vrot.slane %v498, 4
      %v500 = vadd.f32 %v498, %v499
      %v501 = vrot.slane %v500, 2
      %v502 = vadd.f32 %v500, %v501
      %v503 = vrot.slane %v502, 1
      %v504 = vadd.f32 %v502, %v503
      %v505 = vsel %vm497, %v490, 0.0
      %v506 = vrot.slane %v505, 4
      %v507 = vadd.f32 %v505, %v506
      %v508 = vrot.slane %v507, 2
      %v509 = vadd.f32 %v507, %v508
      %v510 = vrot.slane %v509, 1
      %v511 = vadd.f32 %v509, %v510
      %v512 = vsel %vm497, %v491, 0.0
      %v513 = vrot.slane %v512, 4
      %v514 = vadd.f32 %v512, %v513
      %v515 = vrot.slane %v514, 2
      %v516 = vadd.f32 %v514, %v515
      %v517 = vrot.slane %v516, 1
      %v518 = vadd.f32 %v516, %v517
      %v519 = vsel %vm497, %v492, 0.0
      %v520 = vrot.slane %v519, 4
      %v521 = vadd.f32 %v519, %v520
      %v522 = vrot.slane %v521, 2
      %v523 = vadd.f32 %v521, %v522
      %v524 = vrot.slane %v523, 1
      %v525 = vadd.f32 %v523, %v524
      %v526 = vsel %vm497, %v493, 0.0
      %v527 = vrot.slane %v526, 4
      %v528 = vadd.f32 %v526, %v527
      %v529 = vrot.slane %v528, 2
      %v530 = vadd.f32 %v528, %v529
      %v531 = vrot.slane %v530, 1
      %v532 = vadd.f32 %v530, %v531
      %v533 = vsel %vm497, %v494, 0.0
      %v534 = vrot.slane %v533, 4
      %v535 = vadd.f32 %v533, %v534
      %v536 = vrot.slane %v535, 2
      %v537 = vadd.f32 %v535, %v536
      %v538 = vrot.slane %v537, 1
      %v539 = vadd.f32 %v537, %v538
      %v540 = vsel %vm497, %v495, 0.0
      %v541 = vrot.slane %v540, 4
      %v542 = vadd.f32 %v540, %v541
      %v543 = vrot.slane %v542, 2
      %v544 = vadd.f32 %v542, %v543
      %v545 = vrot.slane %v544, 1
      %v546 = vadd.f32 %v544, %v545
      %v547 = vsel %vm497, %v496, 0.0
      %v548 = vrot.slane %v547, 4
      %v549 = vadd.f32 %v547, %v548
      %v550 = vrot.slane %v549, 2
      %v551 = vadd.f32 %v549, %v550
      %v552 = vrot.slane %v551, 1
      %v553 = vadd.f32 %v551, %v552
      %vm562 = vcmask 1041409
      %v563 = vsel %vm562, %v511, %v504
      %vm564 = vcmask 1042434
      %v565 = vsel %vm564, %v518, %v563
      %vm566 = vcmask 1043459
      %v567 = vsel %vm566, %v525, %v565
      %vm568 = vcmask 1044484
      %v569 = vsel %vm568, %v532, %v567
      %vm570 = vcmask 1045509
      %v571 = vsel %vm570, %v539, %v569
      %vm572 = vcmask 1046534
      %v573 = vsel %vm572, %v546, %v571
      %vm574 = vcmask 1047559
      %v575 = vsel %vm574, %v553, %v573
      %577 = vst.msk [vmem:[%s274] sm:$0xff] %vm497, %v575
      %p578 = scmp.lt.s32.totalorder %s18, 1
      %s579 = scalar_select %p578, %s18, 1
      %s580 = smul.addr %s579, 8
      %s581 = scalar_lea.vmem %s6, %s580
      // Predicated region
      $region45: #{property_pallas.1} parent=43 // pred_check
        %p582 = pneg %p172
      $region46: #{property_pallas.1} parent=43 // pred_check_branch
        %584 = sbr.rel (%p582) target = $region48
      $region47: #{property_pallas.1} parent=43 // pred_region
        _
      $region48: #{property_pallas.1} parent=43 // pred_fallthru
        _
    $region44: #{property_pallas.1} parent=5 // pred_fallthru
      _
    %p585 = scmp.le.s32.totalorder 2, %s13
    // Predicated region
    $region49: #{property_pallas.1} parent=5 // pred_check
      %p586 = pneg %p585
    $region50: #{property_pallas.1} parent=5 // pred_check_branch
      %588 = sbr.rel (%p586) target = $region52
    $region51: #{property_pallas.1} parent=5 // pred_region
      %s589 = ssub.s32 %s13, 2
      // Predicated region
      $region53: #{property_pallas.1} parent=51 // pred_check
        %p590 = pneg %p178
      $region54: #{property_pallas.1} parent=51 // pred_check_branch
        %592 = sbr.rel (%p590) target = $region56
      $region55: #{property_pallas.1} parent=51 // pred_region
        %p593 = scmp.lt.s32.totalorder %s19, 1
        %s594 = scalar_select %p593, %s19, 1
        %s595 = smul.addr %s594, 8
        %s596 = scalar_lea.vmem %s6, %s595
      $region56: #{property_pallas.1} parent=51 // pred_fallthru
        _
    $region52: #{property_pallas.1} parent=5 // pred_fallthru
      _
  $region6: #{property_pallas.1} parent=0 // loop_footer
    %s17 = sadd.s32 1, %s13
  $region7: #{property_pallas.1} parent=0 // loop_footer_branch
    %12 = sbr.rel target = $region3
  $region8: #{property_pallas.1} parent=0 // loop_exit
    _

</llo_original>
